<compile_context>
chip_gen: v7x
topology: tpu7x:2x2x1
jax: 0.10.0
libtpu: 0.0.40
codegen_flags: <defaults>
</compile_context>

<pallas_src>
import functools

import jax
import jax.numpy as jnp
from jax.experimental import pallas as pl
from jax.experimental.pallas import tpu as pltpu

LANE = 128      # TPU vreg lane width
TM_MAX = 512    # max rows per grid step (amortises ~0.35us per-step overhead)


def _round_up(v, m):
    return ((v + m - 1) // m) * m


def _cos_linear_kernel(x_ref, w_ref, o_ref, *, inv_scale, eps):
    """One M-tile of: (x/||x||) @ (W/||W||).T * inv_scale.

    x_ref : (TM, K)  f32   input rows for this grid step
    w_ref : (Np, K)  f32   full weight (rows zero-padded to Np), VMEM-resident
    o_ref : (TM, Np) f32   lane-dense output tile
    """
    x = x_ref[...]
    w = w_ref[...]

    # Row-wise L2 normalisation in f32 (matches torch: divide by (norm + eps)).
    x_norm = jnp.sqrt(jnp.sum(x * x, axis=1, keepdims=True))
    xn = x * (1.0 / (x_norm + eps))
    w_norm = jnp.sqrt(jnp.sum(w * w, axis=1, keepdims=True))
    wn = w * (1.0 / (w_norm + eps))          # zero-padded rows stay exactly 0

    # MXU matmul: bf16 operands (values bounded in [-1, 1]), f32 accumulation.
    cos = jax.lax.dot_general(
        xn.astype(jnp.bfloat16),
        wn.astype(jnp.bfloat16),
        dimension_numbers=(((1,), (1,)), ((), ())),   # contract K of both
        preferred_element_type=jnp.float32,
    )
    o_ref[...] = (cos * inv_scale).astype(o_ref.dtype)


def cos_linear(x, weight, *, scale=0.09, eps=1e-6):
    """scores = x_normalized @ weight_normalized.T / scale.

    x      : [M, indim]
    weight : [outdim, indim]   (PyTorch nn.Linear layout, bias=False)
    """
    x = jnp.asarray(x, jnp.float32)
    weight = jnp.asarray(weight, jnp.float32)
    M, K = x.shape
    N, Kw = weight.shape
    assert K == Kw, (x.shape, weight.shape)

    # Lane-dense output: pad outdim up to a multiple of 128 with zero rows.
    # (In a real model this padded weight would be prepared once, not per call.)
    Np = max(_round_up(N, LANE), LANE)
    if Np != N:
        weight = jnp.pad(weight, ((0, Np - N), (0, 0)))

    # M tiling: if M <= TM_MAX the block equals the full M dim (allowed even
    # when not a multiple of 8); otherwise TM=512 and Pallas masks the ragged
    # last block — no wrapper-side jnp.pad of M.
    TM = M if M <= TM_MAX else TM_MAX
    grid_m = pl.cdiv(M, TM)

    kernel = functools.partial(_cos_linear_kernel,
                               inv_scale=1.0 / scale, eps=eps)
    out = pl.pallas_call(
        kernel,
        out_shape=jax.ShapeDtypeStruct((M, Np), jnp.float32),
        grid=(grid_m,),
        in_specs=[
            pl.BlockSpec((TM, K), lambda i: (i, 0)),   # x rows for this step
            pl.BlockSpec((Np, K), lambda i: (0, 0)),   # weight, resident
        ],
        out_specs=pl.BlockSpec((TM, Np), lambda i: (i, 0)),
        compiler_params=pltpu.CompilerParams(
            dimension_semantics=("parallel",)),        # shard M tiles across TCs
    )(x, weight)
    return out[:, :N] if Np != N else out


def cos_linear_ref(x, weight, scale=0.09, eps=1e-6):
    """Pure-JAX reference (mirrors the PyTorch forward exactly)."""
    xn = x / (jnp.linalg.norm(x, axis=1, keepdims=True) + eps)
    wn = weight / (jnp.linalg.norm(weight, axis=1, keepdims=True) + eps)
    return (xn @ wn.T) / scale


if __name__ == "__main__":
    key = jax.random.PRNGKey(0)
    kx, kw = jax.random.split(key)

    # cosLinear(indim=160, outdim=100): reduced-ResNet18 features -> classes.
    batch, indim, outdim = 4, 160, 100
    x = jax.random.normal(kx, (batch, indim), jnp.float32)
    bound = 1.0 / (indim ** 0.5)   # nn.Linear default init (bias=False)
    weight = jax.random.uniform(kw, (outdim, indim), jnp.float32, -bound, bound)

    fwd = jax.jit(cos_linear)
    scores = jax.block_until_ready(fwd(x, weight))

    assert scores.shape == (batch, outdim), scores.shape
    assert bool(jnp.all(jnp.isfinite(scores)))
    ref = cos_linear_ref(x, weight)
    # bf16 MXU operands -> allow ~0.5% relative deviation from the f32 reference.
    assert bool(jnp.allclose(scores, ref, rtol=2e-2, atol=5e-2)), (
        float(jnp.max(jnp.abs(scores - ref))))
    print("KERNEL_OK")
</pallas_src>

<mosaic_0001>
module attributes {stable_mosaic.version = 11 : i64} {
  func.func @_cos_linear_kernel(%arg0: i32, %arg1: memref<4x160xf32, #tpu.memory_space<vmem>>, %arg2: memref<128x160xf32, #tpu.memory_space<vmem>>, %arg3: memref<4x128xf32, #tpu.memory_space<vmem>>) attributes {dimension_semantics = [#tpu.dimension_semantics<parallel>], iteration_bounds = array<i64: 1>, scalar_prefetch = 0 : i64, scratch_operands = 0 : i64, tpu.core_type = #tpu.core_type<tc>, window_params = [{transform_indices = @transform_0, window_bounds = array<i64: 4, 160>}, {pipeline_mode = #tpu.pipeline_mode<synchronous>, transform_indices = @transform_1, window_bounds = array<i64: 128, 160>}, {transform_indices = @transform_2, window_bounds = array<i64: 4, 128>}]} {
    %c0 = arith.constant 0 : index
    %c0_0 = arith.constant 0 : index
    %0 = vector.load %arg1[%c0, %c0_0] : memref<4x160xf32, #tpu.memory_space<vmem>>, vector<4x160xf32>
    %c0_1 = arith.constant 0 : index
    %c0_2 = arith.constant 0 : index
    %1 = vector.load %arg2[%c0_1, %c0_2] : memref<128x160xf32, #tpu.memory_space<vmem>>, vector<128x160xf32>
    %2 = arith.mulf %0, %0 : vector<4x160xf32>
    %cst = arith.constant dense<0.000000e+00> : vector<4xf32>
    %3 = vector.multi_reduction <add>, %2, %cst [1] : vector<4x160xf32> to vector<4xf32>
    %4 = vector.shape_cast %3 : vector<4xf32> to vector<4x1xf32>
    %5 = math.sqrt %4 : vector<4x1xf32>
    %cst_3 = arith.constant 9.99999997E-7 : f32
    %6 = vector.broadcast %cst_3 : f32 to vector<4x1xf32>
    %7 = arith.addf %5, %6 : vector<4x1xf32>
    %cst_4 = arith.constant 1.000000e+00 : f32
    %8 = vector.broadcast %cst_4 : f32 to vector<4x1xf32>
    %9 = arith.divf %8, %7 : vector<4x1xf32>
    %10 = vector.broadcast %9 : vector<4x1xf32> to vector<4x160xf32>
    %11 = arith.mulf %0, %10 : vector<4x160xf32>
    %12 = arith.mulf %1, %1 : vector<128x160xf32>
    %cst_5 = arith.constant dense<0.000000e+00> : vector<128xf32>
    %13 = vector.multi_reduction <add>, %12, %cst_5 [1] : vector<128x160xf32> to vector<128xf32>
    %14 = vector.shape_cast %13 : vector<128xf32> to vector<128x1xf32>
    %15 = math.sqrt %14 : vector<128x1xf32>
    %cst_6 = arith.constant 9.99999997E-7 : f32
    %16 = vector.broadcast %cst_6 : f32 to vector<128x1xf32>
    %17 = arith.addf %15, %16 : vector<128x1xf32>
    %cst_7 = arith.constant 1.000000e+00 : f32
    %18 = vector.broadcast %cst_7 : f32 to vector<128x1xf32>
    %19 = arith.divf %18, %17 : vector<128x1xf32>
    %20 = vector.broadcast %19 : vector<128x1xf32> to vector<128x160xf32>
    %21 = arith.mulf %1, %20 : vector<128x160xf32>
    %22 = arith.truncf %11 : vector<4x160xf32> to vector<4x160xbf16>
    %23 = arith.truncf %21 : vector<128x160xf32> to vector<128x160xbf16>
    %cst_8 = arith.constant dense<0.000000e+00> : vector<4x128xf32>
    %24 = tpu.matmul %22, %23, %cst_8 {dimension_numbers = #tpu.dot_dimension_numbers<[1], [1], [0], [0], [0, 0, 1, 0], [], []>} : vector<4x160xbf16>, vector<128x160xbf16>, vector<4x128xf32> -> vector<4x128xf32>
    %cst_9 = arith.constant 11.1111107 : f32
    %25 = vector.broadcast %cst_9 : f32 to vector<4x128xf32>
    %26 = arith.mulf %24, %25 : vector<4x128xf32>
    %c0_10 = arith.constant 0 : index
    %c0_11 = arith.constant 0 : index
    %27 = vector.load %arg3[%c0_10, %c0_11] : memref<4x128xf32, #tpu.memory_space<vmem>>, vector<4x128xf32>
    tpu.vector_store %arg3[%c0_10, %c0_11], %26 {strides = array<i32>} : memref<4x128xf32, #tpu.memory_space<vmem>>, vector<4x128xf32>,
    return
  }
  func.func @transform_0(%arg0: i32) -> (i32, i32) {
    %c0_i32 = arith.constant 0 : i32
    %c0_i32_0 = arith.constant 0 : i32
    return %arg0, %c0_i32 : i32, i32
  }
  func.func @transform_1(%arg0: i32) -> (i32, i32) {
    %c0_i32 = arith.constant 0 : i32
    %c0_i32_0 = arith.constant 0 : i32
    %c0_i32_1 = arith.constant 0 : i32
    return %c0_i32, %c0_i32_0 : i32, i32
  }
  func.func @transform_2(%arg0: i32) -> (i32, i32) {
    %c0_i32 = arith.constant 0 : i32
    %c0_i32_0 = arith.constant 0 : i32
    return %arg0, %c0_i32 : i32, i32
  }
}

</mosaic_0001>

<llo_original>
// kernel: cos_linear.1
$region0: #{cos_linear.1}
  #allocation0 [shape = 'u32[]', space=smem, size = 0x4, offset = 0x4, fixed_abs, tag = 'smem constant byte address 0x4 - core index']
  #allocation1 [shape = 'u32[144,128]{1,0:T(1,128)}', space=vmem, size = 0x12000, scoped, tag = 'internal scratch']
  %s0 = inlined_call_operand.vmem [shape: f32[4,160], index: 0, kind: input, shape index: {}]
  %s1 = inlined_call_operand.vmem [shape: f32[128,160], index: 1, kind: input, shape index: {}]
  %s2 = inlined_call_operand.hbm [shape: f32[4,128], index: 2, kind: output, shape index: {}]
  %s3 = sld [smem:[#allocation0]]
  $region18: #{cos_linear.1} parent=0
    _
  %s5 = ssub.s32 1, %s3
  %s6 = scalar_select 0, %s5, %s3
  $region1: #{cos_linear.1} parent=0
    #allocation2 [shape = 'u8[2048]{0}', space=vmem, size = 0x800, scoped, tag = 'output window, operand 0, single buffered']
    #allocation3 [shape = 's32[1]{0}', space=sflag, size = 0x4, scoped, tag = 'scoped memory for cos_linear.1']
    %7 = vsyncpa [#allocation3], 0
    // Predicated region
    $region2: #{cos_linear.1} parent=1 // pred_check
      _
    $region3: #{cos_linear.1} parent=1 // pred_check_branch
      %9 = sbr.rel (0) target = $region5
    $region4: #{cos_linear.1} parent=1 // pred_region
      _
    $region5: #{cos_linear.1} parent=1 // pred_fallthru
      _
    // Predicated region
    $region6: #{cos_linear.1} parent=1 // pred_check
      _
    $region7: #{cos_linear.1} parent=1 // pred_check_branch
      %11 = sbr.rel (0) target = $region9
    $region8: #{cos_linear.1} parent=1 // pred_region
      _
    $region9: #{cos_linear.1} parent=1 // pred_fallthru
      _
    %v13 = vld [vmem:[%s0] sm:$0xff]
    %v14 = vld [vmem:[%s1] sm:$0xff]
    %v15 = vld [vmem:[%s1 + $0x8] sm:$0xff]
    %v16 = vld [vmem:[%s1 + $0x10] sm:$0xff]
    %v17 = vld [vmem:[%s1 + $0x18] sm:$0xff]
    %v18 = vld [vmem:[%s1 + $0x20] sm:$0xff]
    %v19 = vld [vmem:[%s1 + $0x28] sm:$0xff]
    %v20 = vld [vmem:[%s1 + $0x30] sm:$0xff]
    %v21 = vld [vmem:[%s1 + $0x38] sm:$0xff]
    %v22 = vld [vmem:[%s1 + $0x40] sm:$0xff]
    %v23 = vld [vmem:[%s1 + $0x48] sm:$0xff]
    %v24 = vld [vmem:[%s1 + $0x50] sm:$0xff]
    %v25 = vld [vmem:[%s1 + $0x58] sm:$0xff]
    %v26 = vld [vmem:[%s1 + $0x60] sm:$0xff]
    %v27 = vld [vmem:[%s1 + $0x68] sm:$0xff]
    %v28 = vld [vmem:[%s1 + $0x70] sm:$0xff]
    %v29 = vld [vmem:[%s1 + $0x78] sm:$0xff]
    %v30 = vld [vmem:[%s1 + $0x80] sm:$0xff]
    %v31 = vld [vmem:[%s1 + $0x88] sm:$0xff]
    %v32 = vld [vmem:[%s1 + $0x90] sm:$0xff]
    %v33 = vld [vmem:[%s1 + $0x98] sm:$0xff]
    %v34 = vld [vmem:[%s1 + $0xa0] sm:$0xff]
    %v35 = vld [vmem:[%s1 + $0xa8] sm:$0xff]
    %v36 = vld [vmem:[%s1 + $0xb0] sm:$0xff]
    %v37 = vld [vmem:[%s1 + $0xb8] sm:$0xff]
    %v38 = vld [vmem:[%s1 + $0xc0] sm:$0xff]
    %v39 = vld [vmem:[%s1 + $0xc8] sm:$0xff]
    %v40 = vld [vmem:[%s1 + $0xd0] sm:$0xff]
    %v41 = vld [vmem:[%s1 + $0xd8] sm:$0xff]
    %v42 = vld [vmem:[%s1 + $0xe0] sm:$0xff]
    %v43 = vld [vmem:[%s1 + $0xe8] sm:$0xff]
    %v44 = vld [vmem:[%s1 + $0xf0] sm:$0xff]
    %v45 = vld [vmem:[%s1 + $0xf8] sm:$0xff]
    %v46 = vmul.f32 %v13, %v13
    %v48 = vcombine.high %v46, %v46
    %vm50 = vcmask 1043456
    %v51 = vsel %vm50, %v46, 0.0
    %vm52 = vcmask 257024
    %v53 = vsel %vm52, %v48, 0.0
    %v54 = vadd.f32 %v51, %v53
    %55 = vadd.xlane.f32.xlu0 %v54
    %v56 = vpop.xlane.xlu0 %55
    %v57 = vrsqrt.pop %v56
    %v58 = vmul.f32 %v56, %v57
    %vm59 = vcmp.eq.f32.partialorder %v56, inf
    %v60 = vsel %vm59, %v56, %v58
    %vm61 = vcmp.eq.f32.partialorder %v56, 0.0
    %v62 = vand.u32 %v56, 2147483648
    %v63 = vsel %vm61, %v62, %v60
    %v64 = vadd.f32 %v63, 1e-06
    %v65 = vrcp.pop %v64
    %v66 = vmul.f32 1.0, %v65
    %v69 = vunpack.c.l.s4 839922192
    %v70 = vunpack.c.0.s8 %v69
    %v71 = vlaneseq
    %v72 = vshrl.u32 %v71, 7
    %v73 = vsub.s32 %v70, %v72
    %v74 = vrot.slane %v66, %v73
    %v76 = vmul.f32 %v13, %v74
    %v77 = vmul.f32 %v14, %v14
    %v78 = vmul.f32 %v15, %v15
    %v79 = vmul.f32 %v16, %v16
    %v80 = vmul.f32 %v17, %v17
    %v81 = vmul.f32 %v18, %v18
    %v82 = vmul.f32 %v19, %v19
    %v83 = vmul.f32 %v20, %v20
    %v84 = vmul.f32 %v21, %v21
    %v85 = vmul.f32 %v22, %v22
    %v86 = vmul.f32 %v23, %v23
    %v87 = vmul.f32 %v24, %v24
    %v88 = vmul.f32 %v25, %v25
    %v89 = vmul.f32 %v26, %v26
    %v90 = vmul.f32 %v27, %v27
    %v91 = vmul.f32 %v28, %v28
    %v92 = vmul.f32 %v29, %v29
    %v93 = vmul.f32 %v30, %v30
    %v94 = vmul.f32 %v31, %v31
    %v95 = vmul.f32 %v32, %v32
    %v96 = vmul.f32 %v33, %v33
    %v97 = vmul.f32 %v34, %v34
    %v98 = vmul.f32 %v35, %v35
    %v99 = vmul.f32 %v36, %v36
    %v100 = vmul.f32 %v37, %v37
    %v101 = vmul.f32 %v38, %v38
    %v102 = vmul.f32 %v39, %v39
    %v103 = vmul.f32 %v40, %v40
    %v104 = vmul.f32 %v41, %v41
    %v105 = vmul.f32 %v42, %v42
    %v106 = vmul.f32 %v43, %v43
    %v107 = vmul.f32 %v44, %v44
    %v108 = vmul.f32 %v45, %v45
    %vm109 = vcmask 261120
    %v110 = vsel %vm109, %v78, 0.0
    %v111 = vadd.f32 %v77, %v110
    %112 = vadd.xlane.f32.xlu0 %v111
    %v113 = vpop.xlane.xlu0 %112
    %v114 = vsel %vm109, %v80, 0.0
    %v115 = vadd.f32 %v79, %v114
    %116 = vadd.xlane.f32.xlu0 %v115
    %v117 = vpop.xlane.xlu0 %116
    %v118 = vsel %vm109, %v82, 0.0
    %v119 = vadd.f32 %v81, %v118
    %120 = vadd.xlane.f32.xlu0 %v119
    %v121 = vpop.xlane.xlu0 %120
    %v122 = vsel %vm109, %v84, 0.0
    %v123 = vadd.f32 %v83, %v122
    %124 = vadd.xlane.f32.xlu0 %v123
    %v125 = vpop.xlane.xlu0 %124
    %v126 = vsel %vm109, %v86, 0.0
    %v127 = vadd.f32 %v85, %v126
    %128 = vadd.xlane.f32.xlu0 %v127
    %v129 = vpop.xlane.xlu0 %128
    %v130 = vsel %vm109, %v88, 0.0
    %v131 = vadd.f32 %v87, %v130
    %132 = vadd.xlane.f32.xlu0 %v131
    %v133 = vpop.xlane.xlu0 %132
    %v134 = vsel %vm109, %v90, 0.0
    %v135 = vadd.f32 %v89, %v134
    %136 = vadd.xlane.f32.xlu0 %v135
    %v137 = vpop.xlane.xlu0 %136
    %v138 = vsel %vm109, %v92, 0.0
    %v139 = vadd.f32 %v91, %v138
    %140 = vadd.xlane.f32.xlu0 %v139
    %v141 = vpop.xlane.xlu0 %140
    %v142 = vsel %vm109, %v94, 0.0
    %v143 = vadd.f32 %v93, %v142
    %144 = vadd.xlane.f32.xlu0 %v143
    %v145 = vpop.xlane.xlu0 %144
    %v146 = vsel %vm109, %v96, 0.0
    %v147 = vadd.f32 %v95, %v146
    %148 = vadd.xlane.f32.xlu0 %v147
    %v149 = vpop.xlane.xlu0 %148
    %v150 = vsel %vm109, %v98, 0.0
    %v151 = vadd.f32 %v97, %v150
    %152 = vadd.xlane.f32.xlu0 %v151
    %v153 = vpop.xlane.xlu0 %152
    %v154 = vsel %vm109, %v100, 0.0
    %v155 = vadd.f32 %v99, %v154
    %156 = vadd.xlane.f32.xlu0 %v155
    %v157 = vpop.xlane.xlu0 %156
    %v158 = vsel %vm109, %v102, 0.0
    %v159 = vadd.f32 %v101, %v158
    %160 = vadd.xlane.f32.xlu0 %v159
    %v161 = vpop.xlane.xlu0 %160
    %v162 = vsel %vm109, %v104, 0.0
    %v163 = vadd.f32 %v103, %v162
    %164 = vadd.xlane.f32.xlu0 %v163
    %v165 = vpop.xlane.xlu0 %164
    %v166 = vsel %vm109, %v106, 0.0
    %v167 = vadd.f32 %v105, %v166
    %168 = vadd.xlane.f32.xlu0 %v167
    %v169 = vpop.xlane.xlu0 %168
    %v170 = vsel %vm109, %v108, 0.0
    %v171 = vadd.f32 %v107, %v170
    %172 = vadd.xlane.f32.xlu0 %v171
    %v173 = vpop.xlane.xlu0 %172
    %v174 = vrsqrt.pop %v113
    %v175 = vmul.f32 %v113, %v174
    %vm176 = vcmp.eq.f32.partialorder %v113, inf
    %v177 = vsel %vm176, %v113, %v175
    %vm178 = vcmp.eq.f32.partialorder %v113, 0.0
    %v179 = vand.u32 %v113, 2147483648
    %v180 = vsel %vm178, %v179, %v177
    %v181 = vrsqrt.pop %v117
    %v182 = vmul.f32 %v117, %v181
    %vm183 = vcmp.eq.f32.partialorder %v117, inf
    %v184 = vsel %vm183, %v117, %v182
    %vm185 = vcmp.eq.f32.partialorder %v117, 0.0
    %v186 = vand.u32 %v117, 2147483648
    %v187 = vsel %vm185, %v186, %v184
    %v188 = vrsqrt.pop %v121
    %v189 = vmul.f32 %v121, %v188
    %vm190 = vcmp.eq.f32.partialorder %v121, inf
    %v191 = vsel %vm190, %v121, %v189
    %vm192 = vcmp.eq.f32.partialorder %v121, 0.0
    %v193 = vand.u32 %v121, 2147483648
    %v194 = vsel %vm192, %v193, %v191
    %v195 = vrsqrt.pop %v125
    %v196 = vmul.f32 %v125, %v195
    %vm197 = vcmp.eq.f32.partialorder %v125, inf
    %v198 = vsel %vm197, %v125, %v196
    %vm199 = vcmp.eq.f32.partialorder %v125, 0.0
    %v200 = vand.u32 %v125, 2147483648
    %v201 = vsel %vm199, %v200, %v198
    %v202 = vrsqrt.pop %v129
    %v203 = vmul.f32 %v129, %v202
    %vm204 = vcmp.eq.f32.partialorder %v129, inf
    %v205 = vsel %vm204, %v129, %v203
    %vm206 = vcmp.eq.f32.partialorder %v129, 0.0
    %v207 = vand.u32 %v129, 2147483648
    %v208 = vsel %vm206, %v207, %v205
    %v209 = vrsqrt.pop %v133
    %v210 = vmul.f32 %v133, %v209
    %vm211 = vcmp.eq.f32.partialorder %v133, inf
    %v212 = vsel %vm211, %v133, %v210
    %vm213 = vcmp.eq.f32.partialorder %v133, 0.0
    %v214 = vand.u32 %v133, 2147483648
    %v215 = vsel %vm213, %v214, %v212
    %v216 = vrsqrt.pop %v137
    %v217 = vmul.f32 %v137, %v216
    %vm218 = vcmp.eq.f32.partialorder %v137, inf
    %v219 = vsel %vm218, %v137, %v217
    %vm220 = vcmp.eq.f32.partialorder %v137, 0.0
    %v221 = vand.u32 %v137, 2147483648
    %v222 = vsel %vm220, %v221, %v219
    %v223 = vrsqrt.pop %v141
    %v224 = vmul.f32 %v141, %v223
    %vm225 = vcmp.eq.f32.partialorder %v141, inf
    %v226 = vsel %vm225, %v141, %v224
    %vm227 = vcmp.eq.f32.partialorder %v141, 0.0
    %v228 = vand.u32 %v141, 2147483648
    %v229 = vsel %vm227, %v228, %v226
    %v230 = vrsqrt.pop %v145
    %v231 = vmul.f32 %v145, %v230
    %vm232 = vcmp.eq.f32.partialorder %v145, inf
    %v233 = vsel %vm232, %v145, %v231
    %vm234 = vcmp.eq.f32.partialorder %v145, 0.0
    %v235 = vand.u32 %v145, 2147483648
    %v236 = vsel %vm234, %v235, %v233
    %v237 = vrsqrt.pop %v149
    %v238 = vmul.f32 %v149, %v237
    %vm239 = vcmp.eq.f32.partialorder %v149, inf
    %v240 = vsel %vm239, %v149, %v238
    %vm241 = vcmp.eq.f32.partialorder %v149, 0.0
    %v242 = vand.u32 %v149, 2147483648
    %v243 = vsel %vm241, %v242, %v240
    %v244 = vrsqrt.pop %v153
    %v245 = vmul.f32 %v153, %v244
    %vm246 = vcmp.eq.f32.partialorder %v153, inf
    %v247 = vsel %vm246, %v153, %v245
    %vm248 = vcmp.eq.f32.partialorder %v153, 0.0
    %v249 = vand.u32 %v153, 2147483648
    %v250 = vsel %vm248, %v249, %v247
    %v251 = vrsqrt.pop %v157
    %v252 = vmul.f32 %v157, %v251
    %vm253 = vcmp.eq.f32.partialorder %v157, inf
    %v254 = vsel %vm253, %v157, %v252
    %vm255 = vcmp.eq.f32.partialorder %v157, 0.0
    %v256 = vand.u32 %v157, 2147483648
    %v257 = vsel %vm255, %v256, %v254
    %v258 = vrsqrt.pop %v161
    %v259 = vmul.f32 %v161, %v258
    %vm260 = vcmp.eq.f32.partialorder %v161, inf
    %v261 = vsel %vm260, %v161, %v259
    %vm262 = vcmp.eq.f32.partialorder %v161, 0.0
    %v263 = vand.u32 %v161, 2147483648
    %v264 = vsel %vm262, %v263, %v261
    %v265 = vrsqrt.pop %v165
    %v266 = vmul.f32 %v165, %v265
    %vm267 = vcmp.eq.f32.partialorder %v165, inf
    %v268 = vsel %vm267, %v165, %v266
    %vm269 = vcmp.eq.f32.partialorder %v165, 0.0
    %v270 = vand.u32 %v165, 2147483648
    %v271 = vsel %vm269, %v270, %v268
    %v272 = vrsqrt.pop %v169
    %v273 = vmul.f32 %v169, %v272
    %vm274 = vcmp.eq.f32.partialorder %v169, inf
    %v275 = vsel %vm274, %v169, %v273
    %vm276 = vcmp.eq.f32.partialorder %v169, 0.0
    %v277 = vand.u32 %v169, 2147483648
    %v278 = vsel %vm276, %v277, %v275
    %v279 = vrsqrt.pop %v173
    %v280 = vmul.f32 %v173, %v279
    %vm281 = vcmp.eq.f32.partialorder %v173, inf
    %v282 = vsel %vm281, %v173, %v280
    %vm283 = vcmp.eq.f32.partialorder %v173, 0.0
    %v284 = vand.u32 %v173, 2147483648
    %v285 = vsel %vm283, %v284, %v282
    %v286 = vadd.f32 %v180, 1e-06
    %v287 = vadd.f32 %v187, 1e-06
    %v288 = vadd.f32 %v194, 1e-06
    %v289 = vadd.f32 %v201, 1e-06
    %v290 = vadd.f32 %v208, 1e-06
    %v291 = vadd.f32 %v215, 1e-06
    %v292 = vadd.f32 %v222, 1e-06
    %v293 = vadd.f32 %v229, 1e-06
    %v294 = vadd.f32 %v236, 1e-06
    %v295 = vadd.f32 %v243, 1e-06
    %v296 = vadd.f32 %v250, 1e-06
    %v297 = vadd.f32 %v257, 1e-06
    %v298 = vadd.f32 %v264, 1e-06
    %v299 = vadd.f32 %v271, 1e-06
    %v300 = vadd.f32 %v278, 1e-06
    %v301 = vadd.f32 %v285, 1e-06
    %v302 = vrcp.pop %v286
    %v303 = vmul.f32 1.0, %v302
    %v304 = vrcp.pop %v287
    %v305 = vmul.f32 1.0, %v304
    %v306 = vrcp.pop %v288
    %v307 = vmul.f32 1.0, %v306
    %v308 = vrcp.pop %v289
    %v309 = vmul.f32 1.0, %v308
    %v310 = vrcp.pop %v290
    %v311 = vmul.f32 1.0, %v310
    %v312 = vrcp.pop %v291
    %v313 = vmul.f32 1.0, %v312
    %v314 = vrcp.pop %v292
    %v315 = vmul.f32 1.0, %v314
    %v316 = vrcp.pop %v293
    %v317 = vmul.f32 1.0, %v316
    %v318 = vrcp.pop %v294
    %v319 = vmul.f32 1.0, %v318
    %v320 = vrcp.pop %v295
    %v321 = vmul.f32 1.0, %v320
    %v322 = vrcp.pop %v296
    %v323 = vmul.f32 1.0, %v322
    %v324 = vrcp.pop %v297
    %v325 = vmul.f32 1.0, %v324
    %v326 = vrcp.pop %v298
    %v327 = vmul.f32 1.0, %v326
    %v328 = vrcp.pop %v299
    %v329 = vmul.f32 1.0, %v328
    %v330 = vrcp.pop %v300
    %v331 = vmul.f32 1.0, %v330
    %v332 = vrcp.pop %v301
    %v333 = vmul.f32 1.0, %v332
    %v334 = vmul.f32 %v14, %v303
    %v335 = vmul.f32 %v15, %v303
    %v336 = vmul.f32 %v16, %v305
    %v337 = vmul.f32 %v17, %v305
    %v338 = vmul.f32 %v18, %v307
    %v339 = vmul.f32 %v19, %v307
    %v340 = vmul.f32 %v20, %v309
    %v341 = vmul.f32 %v21, %v309
    %v342 = vmul.f32 %v22, %v311
    %v343 = vmul.f32 %v23, %v311
    %v344 = vmul.f32 %v24, %v313
    %v345 = vmul.f32 %v25, %v313
    %v346 = vmul.f32 %v26, %v315
    %v347 = vmul.f32 %v27, %v315
    %v348 = vmul.f32 %v28, %v317
    %v349 = vmul.f32 %v29, %v317
    %v350 = vmul.f32 %v30, %v319
    %v351 = vmul.f32 %v31, %v319
    %v352 = vmul.f32 %v32, %v321
    %v353 = vmul.f32 %v33, %v321
    %v354 = vmul.f32 %v34, %v323
    %v355 = vmul.f32 %v35, %v323
    %v356 = vmul.f32 %v36, %v325
    %v357 = vmul.f32 %v37, %v325
    %v358 = vmul.f32 %v38, %v327
    %v359 = vmul.f32 %v39, %v327
    %v360 = vmul.f32 %v40, %v329
    %v361 = vmul.f32 %v41, %v329
    %v362 = vmul.f32 %v42, %v331
    %v363 = vmul.f32 %v43, %v331
    %v364 = vmul.f32 %v44, %v333
    %v365 = vmul.f32 %v45, %v333
    %v367 = vcombine.high %v76, %v76
    %v369 = vpack.c.bf16 %v76, %v76
    %v370 = vpack.c.bf16 %v367, %v367
    %v371 = vpack.c.bf16 %v336, %v334
    %v372 = vpack.c.bf16 %v337, %v335
    %v373 = vpack.c.bf16 %v340, %v338
    %v374 = vpack.c.bf16 %v341, %v339
    %v375 = vpack.c.bf16 %v344, %v342
    %v376 = vpack.c.bf16 %v345, %v343
    %v377 = vpack.c.bf16 %v348, %v346
    %v378 = vpack.c.bf16 %v349, %v347
    %v379 = vpack.c.bf16 %v352, %v350
    %v380 = vpack.c.bf16 %v353, %v351
    %v381 = vpack.c.bf16 %v356, %v354
    %v382 = vpack.c.bf16 %v357, %v355
    %v383 = vpack.c.bf16 %v360, %v358
    %v384 = vpack.c.bf16 %v361, %v359
    %v385 = vpack.c.bf16 %v364, %v362
    %v386 = vpack.c.bf16 %v365, %v363
    %v388 = vsel %vm109, %v370, 0
    %v391 = vsel %vm109, %v372, 0
    %v394 = vsel %vm109, %v374, 0
    %v397 = vsel %vm109, %v376, 0
    %v400 = vsel %vm109, %v378, 0
    %v403 = vsel %vm109, %v380, 0
    %v406 = vsel %vm109, %v382, 0
    %v409 = vsel %vm109, %v384, 0
    %v412 = vsel %vm109, %v386, 0
    %414 = vmatprep.subr.bf16.mxu0 %v391
    %415 = vmatpush1.bf16.xpose.msra.mxu0 %v371
    %416 = vmatprep.subr.bf16.mxu0 %v394
    %417 = vmatpush1.bf16.xpose.msra.mxu0 %v373
    %418 = vmatprep.subr.bf16.mxu0 %v397
    %419 = vmatpush1.bf16.xpose.msra.mxu0 %v375
    %420 = vmatprep.subr.bf16.mxu0 %v400
    %421 = vmatpush1.bf16.xpose.msra.mxu0 %v377
    %422 = vmatprep.subr.bf16.mxu0 %v403
    %423 = vmatpush1.bf16.xpose.msra.mxu0 %v379
    %424 = vmatprep.subr.bf16.mxu0 %v406
    %425 = vmatpush1.bf16.xpose.msra.mxu0 %v381
    %426 = vmatprep.subr.bf16.mxu0 %v409
    %427 = vmatpush1.bf16.xpose.msra.mxu0 %v383
    %428 = vmatprep.subr.bf16.mxu0 %v412
    %429 = vmatpush1.bf16.xpose.msra.mxu0 %v385
    %430 = vmatprep.subr.bf16.mxu0 0
    %431 = vmatpush1.bf16.xpose.msra.mxu0 0
    %432 = vmatprep.subr.bf16.mxu0 0
    %433 = vmatpush1.bf16.xpose.msra.mxu0 0
    %434 = vmatprep.subr.bf16.mxu0 0
    %435 = vmatpush1.bf16.xpose.msra.mxu0 0
    %436 = vmatprep.subr.bf16.mxu0 0
    %437 = vmatpush1.bf16.xpose.msra.mxu0 0
    %438 = vmatprep.subr.bf16.mxu0 0
    %439 = vmatpush1.bf16.xpose.msra.mxu0 0
    %440 = vmatprep.subr.bf16.mxu0 0
    %441 = vmatpush1.bf16.xpose.msra.mxu0 0
    %442 = vmatprep.subr.bf16.mxu0 0
    %443 = vmatpush1.bf16.xpose.msra.mxu0 0
    %444 = vmatprep.subr.bf16.mxu0 0
    %445 = vmatpush1.bf16.xpose.msra.mxu0 0
    %446 = vmatprep.mubr.bf16.mxu0 %v388
    %447 = vmatmul.mubr.bf16.gmra.mrb[0].mxu0 %v369
    %v448 = vpop.f32.mrb[0].mxu0
    %v449 = vadd.f32 0.0, %v448
    %v450 = vpop.f32.mrb[0].mxu0
    %v451 = vpop.f32.mrb[0].mxu0
    %v452 = vpop.f32.mrb[0].mxu0
    %453 = vdwg.mxu0
    %v454 = vmul.f32 %v449, 11.111111
    %455 = vst [vmem:[#allocation2] sm:$0xf] %v454
    // Predicated region
    $region10: #{cos_linear.1} parent=1 // pred_check
      _
    $region11: #{cos_linear.1} parent=1 // pred_check_branch
      %457 = sbr.rel (0) target = $region13
    $region12: #{cos_linear.1} parent=1 // pred_region
      %s459 = ssub.s32 64, 64
      %460 = vsyncadd [#allocation3], %s459
      %s462 = sshll.u32 [#allocation2], 4
      %s463 = int_to_ptr.vmem [resolvable:$true] %s462
      %465 = dma.vmem_to_hbm [thread:$0]  %s463, 64, %s2, [#allocation3]
    $region13: #{cos_linear.1} parent=1 // pred_fallthru
      _
    // Predicated region
    $region14: #{cos_linear.1} parent=1 // pred_check
      _
    $region15: #{cos_linear.1} parent=1 // pred_check_branch
      %467 = sbr.rel (0) target = $region17
    $region16: #{cos_linear.1} parent=1 // pred_region
      %468 = dma.done [#allocation3], 64
    $region17: #{cos_linear.1} parent=1 // pred_fallthru
      _
    %469 = vsyncpa [#allocation3], 1

</llo_original>
